<compile_context>
chip_gen: v7x
topology: tpu7x:2x2x1
jax: 0.10.0
libtpu: 0.0.40
codegen_flags: <defaults>
</compile_context>

<pallas_src>
import math

import jax
import jax.numpy as jnp
from jax import lax
from jax.experimental import pallas as pl
from jax.experimental.pallas import tpu as pltpu


def _pick_tile(n, cap):
    """Largest power-of-two tile <= cap that divides n (falls back to n)."""
    t = cap
    while t >= 8:
        if n % t == 0:
            return t
        t //= 2
    return n


# ---------------------------------------------------------------------------
# Linear kernel: y = x @ W + b   (x, W in bf16; accumulate + bias in f32)
# ---------------------------------------------------------------------------
def _linear_kernel(x_ref, w_ref, b_ref, o_ref):
    acc = jnp.dot(x_ref[...], w_ref[...], preferred_element_type=jnp.float32)
    o_ref[...] = (acc + b_ref[...]).astype(o_ref.dtype)


def _linear(x, w_t, b, out_dtype):
    """x: (M, K) bf16, w_t: (K, N) bf16 (pre-transposed), b: (1, N) f32."""
    M, K = x.shape
    N = w_t.shape[1]
    tm = _pick_tile(M, 512)
    return pl.pallas_call(
        _linear_kernel,
        out_shape=jax.ShapeDtypeStruct((M, N), out_dtype),
        grid=(M // tm,),
        in_specs=[
            pl.BlockSpec((tm, K), lambda i: (i, 0)),
            # Constant index_map -> weight/bias tiles are DMA'd once and stay
            # resident in VMEM across the whole grid (no re-streaming per step).
            # (For very large E, additionally tile K/N and single-buffer weights.)
            pl.BlockSpec((K, N), lambda i: (0, 0)),
            pl.BlockSpec((1, N), lambda i: (0, 0)),
        ],
        out_specs=pl.BlockSpec((tm, N), lambda i: (i, 0)),
        compiler_params=pltpu.CompilerParams(
            dimension_semantics=("parallel",),
            vmem_limit_bytes=48 * 1024 * 1024,
        ),
    )(x, w_t, b)


# ---------------------------------------------------------------------------
# Flash-style GQA attention kernel.
#   q  : (B, n_group, n_q_tiles, n_head_group*tq, d)  -- group's heads stacked on M
#   k,v: (B, n_group, T, d)
#   out: same layout as q
# ---------------------------------------------------------------------------
def _make_flash_kernel(scale):
    def kernel(q_ref, k_ref, v_ref, o_ref, m_sc, l_sc, acc_sc):
        kv = pl.program_id(3)

        @pl.when(kv == 0)
        def _():
            m_sc[...] = jnp.full(m_sc.shape, -jnp.inf, dtype=m_sc.dtype)
            l_sc[...] = jnp.zeros(l_sc.shape, dtype=l_sc.dtype)
            acc_sc[...] = jnp.zeros(acc_sc.shape, dtype=acc_sc.dtype)

        q = q_ref[...]          # (n_head_group*tq, d)  bf16
        k = k_ref[...]          # (tk, d)               bf16
        v = v_ref[...]          # (tk, d)               bf16

        # Q.K^T as an "NT" dot_general: contract the d axes directly, no explicit
        # transpose/relayout of K.  f32 accumulation on the MXU.
        s = lax.dot_general(q, k, (((1,), (1,)), ((), ())),
                            preferred_element_type=jnp.float32) * scale

        # Online softmax update (all f32).
        m_prev = m_sc[...]
        m_new = jnp.maximum(m_prev, jnp.max(s, axis=-1, keepdims=True))
        alpha = jnp.exp(m_prev - m_new)
        p = jnp.exp(s - m_new)
        l_sc[...] = alpha * l_sc[...] + jnp.sum(p, axis=-1, keepdims=True)
        acc_sc[...] = alpha * acc_sc[...] + jnp.dot(
            p.astype(v.dtype), v, preferred_element_type=jnp.float32)
        m_sc[...] = m_new

        @pl.when(kv == pl.num_programs(3) - 1)
        def _():
            inv_l = pl.reciprocal(l_sc[...], approx=True)   # EUP, frees VALU slots
            o_ref[...] = (acc_sc[...] * inv_l).astype(o_ref.dtype)

    return kernel


def _flash_attention(q5, k_g, v_g, tk, out_dtype):
    B, n_group, n_q, hq, d = q5.shape     # hq = n_head_group * tq
    T = k_g.shape[2]
    n_kv = T // tk
    scale = 1.0 / math.sqrt(d)

    # Advisory cost estimate so XLA schedules sensibly around the call.
    score_elems = B * n_group * n_q * hq * T
    cost = pl.CostEstimate(
        flops=int(4 * score_elems * d),                  # QK^T + PV
        transcendentals=int(score_elems),                # exp
        bytes_accessed=int((q5.size + k_g.size + v_g.size) * q5.dtype.itemsize
                           + q5.size * jnp.dtype(out_dtype).itemsize),
    )

    return pl.pallas_call(
        _make_flash_kernel(scale),
        out_shape=jax.ShapeDtypeStruct(q5.shape, out_dtype),
        grid=(B, n_group, n_q, n_kv),
        in_specs=[
            # Leading size-1 block dims are squeezed (None) -> 2-D refs in-kernel.
            pl.BlockSpec((None, None, None, hq, d),
                         lambda b, g, qi, kv: (b, g, qi, 0, 0)),
            pl.BlockSpec((None, None, tk, d),
                         lambda b, g, qi, kv: (b, g, kv, 0)),
            pl.BlockSpec((None, None, tk, d),
                         lambda b, g, qi, kv: (b, g, kv, 0)),
        ],
        out_specs=pl.BlockSpec((None, None, None, hq, d),
                               lambda b, g, qi, kv: (b, g, qi, 0, 0)),
        scratch_shapes=[
            pltpu.VMEM((hq, 1), jnp.float32),   # running max
            pltpu.VMEM((hq, 1), jnp.float32),   # running sum
            pltpu.VMEM((hq, d), jnp.float32),   # output accumulator (f32)
        ],
        compiler_params=pltpu.CompilerParams(
            dimension_semantics=("parallel", "parallel", "parallel", "arbitrary"),
            vmem_limit_bytes=48 * 1024 * 1024,   # fits v7x's 64 MiB with headroom
        ),
        cost_estimate=cost,
    )(q5, k_g, v_g)


# ---------------------------------------------------------------------------
# Full forward pass
# ---------------------------------------------------------------------------
def group_query_attention(q, k, v, params, n_head, n_group, mask=False):
    """GQA forward. q/k/v: (B, T, E) float32. params in PyTorch nn.Linear layout."""
    # TODO(synk): masked_fill(-inf) path (mask != False) not implemented.
    assert mask is False, "mask path not implemented"
    B, T, E = q.shape
    assert E % n_head == 0 and n_head % n_group == 0
    d = E // n_head
    n_hg = n_head // n_group
    wq, bq, wk, bk, wv, bv, wo, bo = params

    bf16 = jnp.bfloat16
    # Glue: pre-transpose weights to (in, out) and cast MXU operands to bf16;
    # biases stay f32 (added after the f32 accumulation).
    wq_t, wk_t, wv_t, wo_t = (w.T.astype(bf16) for w in (wq, wk, wv, wo))
    bq2, bk2, bv2, bo2 = (b.reshape(1, -1).astype(jnp.float32)
                          for b in (bq, bk, bv, bo))

    M = B * T
    # Input projections over the flattened (B*T, E) activations; bf16 intermediates.
    qp = _linear(q.reshape(M, E).astype(bf16), wq_t, bq2, bf16)   # (M, E)
    kp = _linear(k.reshape(M, E).astype(bf16), wk_t, bk2, bf16)   # (M, n_group*d)
    vp = _linear(v.reshape(M, E).astype(bf16), wv_t, bv2, bf16)   # (M, n_group*d)

    # Flash tiling parameters over the sequence.
    tq = _pick_tile(T, 256)
    tk = _pick_tile(T, 256)
    n_q = T // tq

    # Layout plumbing only (XLA reshape/transpose, no compute):
    #   q -> (B, n_group, n_q, n_hg*tq, d): the group's query heads stacked along M.
    #   k, v -> (B, n_group, T, d).
    q5 = (qp.reshape(B, n_q, tq, n_group, n_hg, d)
            .transpose(0, 3, 1, 4, 2, 5)
            .reshape(B, n_group, n_q, n_hg * tq, d))
    k_g = kp.reshape(B, T, n_group, d).transpose(0, 2, 1, 3)
    v_g = vp.reshape(B, T, n_group, d).transpose(0, 2, 1, 3)

    ctx5 = _flash_attention(q5, k_g, v_g, tk, bf16)   # (B, n_group, n_q, n_hg*tq, d)

    # Un-stack heads, merge back to (B*T, E), then output projection (f32 out).
    ctx2 = (ctx5.reshape(B, n_group, n_q, n_hg, tq, d)
                .transpose(0, 2, 4, 1, 3, 5)
                .reshape(M, E))
    out = _linear(ctx2, wo_t, bo2, q.dtype)
    return out.reshape(B, T, E)


# ---------------------------------------------------------------------------
# Pure-JAX reference (intended PyTorch semantics), mirroring the kernel's bf16
# matmul operands / f32 accumulation so the comparison only has to absorb the
# flash-softmax reassociation and the approximate reciprocal.
# ---------------------------------------------------------------------------
def reference_gqa(q, k, v, params, n_head, n_group):
    B, T, E = q.shape
    d = E // n_head
    n_hg = n_head // n_group
    wq, bq, wk, bk, wv, bv, wo, bo = params
    cd, f32 = jnp.bfloat16, jnp.float32

    def lin(x, w, b):
        y = jnp.dot(x.reshape(-1, x.shape[-1]).astype(cd), w.T.astype(cd),
                    preferred_element_type=f32) + b
        return y.reshape(B, T, -1).astype(cd)

    qp, kp, vp = lin(q, wq, bq), lin(k, wk, bk), lin(v, wv, bv)
    qh = qp.reshape(B, T, n_head, d).transpose(0, 2, 1, 3)
    kh = kp.reshape(B, T, n_group, d).transpose(0, 2, 1, 3)
    vh = vp.reshape(B, T, n_group, d).transpose(0, 2, 1, 3)
    kh = jnp.repeat(kh, n_hg, axis=1)
    vh = jnp.repeat(vh, n_hg, axis=1)
    s = jnp.einsum('bhqd,bhkd->bhqk', qh, kh,
                   preferred_element_type=f32) / math.sqrt(d)
    p = jax.nn.softmax(s, axis=-1)
    ctx = jnp.einsum('bhqk,bhkd->bhqd', p.astype(cd), vh,
                     preferred_element_type=f32)
    ctx = ctx.transpose(0, 2, 1, 3).reshape(B, T, E).astype(cd)
    out = jnp.dot(ctx.reshape(-1, E), wo.T.astype(cd),
                  preferred_element_type=f32) + bo
    return out.reshape(B, T, E)


if __name__ == "__main__":
    B, T, E = 2, 8, 32
    n_head, n_group = 4, 2
    d = E // n_head
    kv_dim = n_group * d

    key = jax.random.PRNGKey(0)
    ks = jax.random.split(key, 11)
    f32 = jnp.float32

    q = jax.random.normal(ks[0], (B, T, E), f32)
    k = jax.random.normal(ks[1], (B, T, E), f32)
    v = jax.random.normal(ks[2], (B, T, E), f32)

    # Parameters in PyTorch nn.Linear layout: W (out, in), b (out,)
    wq = jax.random.normal(ks[3], (E, E), f32) * 0.1
    bq = jax.random.normal(ks[4], (E,), f32) * 0.1
    wk = jax.random.normal(ks[5], (kv_dim, E), f32) * 0.1
    bk = jax.random.normal(ks[6], (kv_dim,), f32) * 0.1
    wv = jax.random.normal(ks[7], (kv_dim, E), f32) * 0.1
    bv = jax.random.normal(ks[8], (kv_dim,), f32) * 0.1
    wo = jax.random.normal(ks[9], (E, E), f32) * 0.1
    bo = jax.random.normal(ks[10], (E,), f32) * 0.1
    params = (wq, bq, wk, bk, wv, bv, wo, bo)

    out = group_query_attention(q, k, v, params, n_head, n_group)
    out = jax.block_until_ready(out)

    ref = reference_gqa(q, k, v, params, n_head, n_group)
    assert out.shape == (B, T, E)
    max_diff = float(jnp.max(jnp.abs(out - ref)))
    assert jnp.allclose(out, ref, atol=3e-2, rtol=3e-2), (
        f"mismatch vs JAX reference (max abs diff = {max_diff})")

    print("KERNEL_OK")
</pallas_src>

<mosaic_0001>
module attributes {stable_mosaic.version = 11 : i64} {
  func.func @_linear_kernel(%arg0: i32, %arg1: memref<16x32xbf16, #tpu.memory_space<vmem>>, %arg2: memref<32x32xbf16, #tpu.memory_space<vmem>>, %arg3: memref<1x32xf32, #tpu.memory_space<vmem>>, %arg4: memref<16x32xbf16, #tpu.memory_space<vmem>>) attributes {dimension_semantics = [#tpu.dimension_semantics<parallel>], iteration_bounds = array<i64: 1>, scalar_prefetch = 0 : i64, scratch_operands = 0 : i64, tpu.core_type = #tpu.core_type<tc>, window_params = [{transform_indices = @transform_0, window_bounds = array<i64: 16, 32>}, {pipeline_mode = #tpu.pipeline_mode<synchronous>, transform_indices = @transform_1, window_bounds = array<i64: 32, 32>}, {pipeline_mode = #tpu.pipeline_mode<synchronous>, transform_indices = @transform_2, window_bounds = array<i64: 1, 32>}, {transform_indices = @transform_3, window_bounds = array<i64: 16, 32>}]} {
    %c0 = arith.constant 0 : index
    %c0_0 = arith.constant 0 : index
    %0 = vector.load %arg1[%c0, %c0_0] : memref<16x32xbf16, #tpu.memory_space<vmem>>, vector<16x32xbf16>
    %c0_1 = arith.constant 0 : index
    %c0_2 = arith.constant 0 : index
    %1 = vector.load %arg2[%c0_1, %c0_2] : memref<32x32xbf16, #tpu.memory_space<vmem>>, vector<32x32xbf16>
    %cst = arith.constant dense<0.000000e+00> : vector<16x32xf32>
    %2 = tpu.matmul %0, %1, %cst {dimension_numbers = #tpu.dot_dimension_numbers<[1], [0], [0], [1], [0, 0, 1, 1], [], []>} : vector<16x32xbf16>, vector<32x32xbf16>, vector<16x32xf32> -> vector<16x32xf32>
    %c0_3 = arith.constant 0 : index
    %c0_4 = arith.constant 0 : index
    %3 = vector.load %arg3[%c0_3, %c0_4] : memref<1x32xf32, #tpu.memory_space<vmem>>, vector<1x32xf32>
    %4 = vector.broadcast %3 : vector<1x32xf32> to vector<16x32xf32>
    %5 = arith.addf %2, %4 : vector<16x32xf32>
    %6 = arith.truncf %5 : vector<16x32xf32> to vector<16x32xbf16>
    %c0_5 = arith.constant 0 : index
    %c0_6 = arith.constant 0 : index
    %7 = vector.load %arg4[%c0_5, %c0_6] : memref<16x32xbf16, #tpu.memory_space<vmem>>, vector<16x32xbf16>
    tpu.vector_store %arg4[%c0_5, %c0_6], %6 {strides = array<i32>} : memref<16x32xbf16, #tpu.memory_space<vmem>>, vector<16x32xbf16>,
    return
  }
  func.func @transform_0(%arg0: i32) -> (i32, i32) {
    %c0_i32 = arith.constant 0 : i32
    %c0_i32_0 = arith.constant 0 : i32
    return %arg0, %c0_i32 : i32, i32
  }
  func.func @transform_1(%arg0: i32) -> (i32, i32) {
    %c0_i32 = arith.constant 0 : i32
    %c0_i32_0 = arith.constant 0 : i32
    %c0_i32_1 = arith.constant 0 : i32
    return %c0_i32, %c0_i32_0 : i32, i32
  }
  func.func @transform_2(%arg0: i32) -> (i32, i32) {
    %c0_i32 = arith.constant 0 : i32
    %c0_i32_0 = arith.constant 0 : i32
    %c0_i32_1 = arith.constant 0 : i32
    return %c0_i32, %c0_i32_0 : i32, i32
  }
  func.func @transform_3(%arg0: i32) -> (i32, i32) {
    %c0_i32 = arith.constant 0 : i32
    %c0_i32_0 = arith.constant 0 : i32
    return %arg0, %c0_i32 : i32, i32
  }
}

</mosaic_0001>

<llo_original>
// kernel: tpu_custom_call.1
$region0: #{tpu_custom_call.1}
  #allocation0 [shape = 'u32[]', space=smem, size = 0x4, offset = 0x4, fixed_abs, tag = 'smem constant byte address 0x4 - core index']
  #allocation1 [shape = 'u32[144,128]{1,0:T(1,128)}', space=vmem, size = 0x12000, scoped, tag = 'internal scratch']
  %s0 = inlined_call_operand.hbm [shape: bf16[16,32], index: 0, kind: input, shape index: {}]
  %s1 = inlined_call_operand.hbm [shape: bf16[32,32], index: 1, kind: input, shape index: {}]
  %s2 = inlined_call_operand.vmem [shape: f32[1,32], index: 2, kind: input, shape index: {}]
  %s3 = inlined_call_operand.hbm [shape: bf16[16,32], index: 3, kind: output, shape index: {}]
  %s4 = sld [smem:[#allocation0]]
  $region30: #{tpu_custom_call.1} parent=0
    _
  %s6 = ssub.s32 1, %s4
  %s7 = scalar_select 0, %s6, %s4
  $region1: #{tpu_custom_call.1} parent=0
    #allocation2 [shape = 'u8[4096]{0}', space=vmem, size = 0x1000, scoped, tag = 'input window, operand 0, single buffered']
    #allocation3 [shape = 's32[1]{0}', space=sflag, size = 0x4, scoped, tag = 'scoped memory for tpu_custom_call.1']
    #allocation4 [shape = 's32[1]{0}', space=sflag, size = 0x4, scoped, tag = 'scoped memory for tpu_custom_call.1']
    #allocation5 [shape = 'u8[8192]{0}', space=vmem, size = 0x2000, scoped, tag = 'input window, operand 1, single buffered']
    #allocation6 [shape = 's32[1]{0}', space=sflag, size = 0x4, scoped, tag = 'scoped memory for tpu_custom_call.1']
    #allocation7 [shape = 'u8[4096]{0}', space=vmem, size = 0x1000, scoped, tag = 'output window, operand 0, single buffered']
    %8 = vsyncpa [#allocation3], 0
    %9 = vsyncpa [#allocation6], 0
    %10 = vsyncpa [#allocation4], 0
    // Predicated region
    $region2: #{tpu_custom_call.1} parent=1 // pred_check
      _
    $region3: #{tpu_custom_call.1} parent=1 // pred_check_branch
      %12 = sbr.rel (0) target = $region5
    $region4: #{tpu_custom_call.1} parent=1 // pred_region
      %s14 = ssub.s32 128, 128
      %15 = vsyncadd [#allocation3], %s14
      %s16 = sshll.u32 [#allocation2], 4
      %s17 = int_to_ptr.vmem [resolvable:$true] %s16
      %22 = dma.hbm_to_vmem [thread:$0]  %s0, 128, %s17, [#allocation3], 64, 64, 4
    $region5: #{tpu_custom_call.1} parent=1 // pred_fallthru
      _
    // Predicated region
    $region6: #{tpu_custom_call.1} parent=1 // pred_check
      _
    $region7: #{tpu_custom_call.1} parent=1 // pred_check_branch
      %24 = sbr.rel (0) target = $region9
    $region8: #{tpu_custom_call.1} parent=1 // pred_region
      %s26 = ssub.s32 256, 256
      %27 = vsyncadd [#allocation6], %s26
      %s28 = sshll.u32 [#allocation5], 4
      %s29 = int_to_ptr.vmem [resolvable:$true] %s28
      %34 = dma.hbm_to_vmem [thread:$0]  %s1, 256, %s29, [#allocation6], 64, 64, 4
    $region9: #{tpu_custom_call.1} parent=1 // pred_fallthru
      _
    // Predicated region
    $region10: #{tpu_custom_call.1} parent=1 // pred_check
      _
    $region11: #{tpu_custom_call.1} parent=1 // pred_check_branch
      %36 = sbr.rel (0) target = $region13
    $region12: #{tpu_custom_call.1} parent=1 // pred_region
      _
    $region13: #{tpu_custom_call.1} parent=1 // pred_fallthru
      _
    // Predicated region
    $region14: #{tpu_custom_call.1} parent=1 // pred_check
      _
    $region15: #{tpu_custom_call.1} parent=1 // pred_check_branch
      %38 = sbr.rel (0) target = $region17
    $region16: #{tpu_custom_call.1} parent=1 // pred_region
      %39 = dma.done [#allocation3], 128
    $region17: #{tpu_custom_call.1} parent=1 // pred_fallthru
      _
    // Predicated region
    $region18: #{tpu_custom_call.1} parent=1 // pred_check
      _
    $region19: #{tpu_custom_call.1} parent=1 // pred_check_branch
      %41 = sbr.rel (0) target = $region21
    $region20: #{tpu_custom_call.1} parent=1 // pred_region
      %42 = dma.done [#allocation6], 256
    $region21: #{tpu_custom_call.1} parent=1 // pred_fallthru
      _
    %v44 = vld [vmem:[#allocation2] sm:$0xf]
    %v45 = vld [vmem:[#allocation2 + $0x4] sm:$0xf]
    %v46 = vld [vmem:[#allocation5] sm:$0xf]
    %v47 = vld [vmem:[#allocation5 + $0x4] sm:$0xf]
    %v48 = vld [vmem:[#allocation5 + $0x8] sm:$0xf]
    %v49 = vld [vmem:[#allocation5 + $0xc] sm:$0xf]
    %v50 = vld [vmem:[%s2] sm:$0x1]
    %v52 = vlaneseq
    %v53 = vshrl.u32 %v52, 7
    %v54 = vsub.s32 0, %v53
    %v55 = vrot.slane %v50, %v54
    %v59 = vunpack.c.l.b16 %v44
    %v60 = vunpack.c.l.b16 %v45
    %v61 = vpack.c.b16 %v60, %v59
    %v66 = vunpack.c.l.b16 %v46
    %v67 = vunpack.c.l.b16 %v47
    %v68 = vunpack.c.l.b16 %v48
    %v69 = vunpack.c.l.b16 %v49
    %v70 = vpack.c.b16 %v67, %v66
    %v71 = vpack.c.b16 %v69, %v68
    %vm74 = vcmask 261120
    %v76 = vsel %vm74, %v61, 0
    %78 = vmatprep.subr.bf16.mxu0 0
    %79 = vmatpush1.bf16.msra.mxu0 %v70
    %80 = vmatprep.subr.bf16.mxu0 0
    %81 = vmatpush1.bf16.msra.mxu0 %v71
    %82 = vmatprep.subr.bf16.mxu0 0
    %83 = vmatpush1.bf16.msra.mxu0 0
    %84 = vmatprep.subr.bf16.mxu0 0
    %85 = vmatpush1.bf16.msra.mxu0 0
    %86 = vmatprep.subr.bf16.mxu0 0
    %87 = vmatpush1.bf16.msra.mxu0 0
    %88 = vmatprep.subr.bf16.mxu0 0
    %89 = vmatpush1.bf16.msra.mxu0 0
    %90 = vmatprep.subr.bf16.mxu0 0
    %91 = vmatpush1.bf16.msra.mxu0 0
    %92 = vmatprep.subr.bf16.mxu0 0
    %93 = vmatpush1.bf16.msra.mxu0 0
    %94 = vmatprep.subr.bf16.mxu0 0
    %95 = vmatpush1.bf16.msra.mxu0 0
    %96 = vmatprep.subr.bf16.mxu0 0
    %97 = vmatpush1.bf16.msra.mxu0 0
    %98 = vmatprep.subr.bf16.mxu0 0
    %99 = vmatpush1.bf16.msra.mxu0 0
    %100 = vmatprep.subr.bf16.mxu0 0
    %101 = vmatpush1.bf16.msra.mxu0 0
    %102 = vmatprep.subr.bf16.mxu0 0
    %103 = vmatpush1.bf16.msra.mxu0 0
    %104 = vmatprep.subr.bf16.mxu0 0
    %105 = vmatpush1.bf16.msra.mxu0 0
    %106 = vmatprep.subr.bf16.mxu0 0
    %107 = vmatpush1.bf16.msra.mxu0 0
    %108 = vmatprep.subr.bf16.mxu0 0
    %109 = vmatpush1.bf16.msra.mxu0 0
    %110 = vmatprep.mubr.bf16.mxu0 0
    %111 = vmatmul.mubr.bf16.gmra.mrb[0].mxu0 %v76
    %v112 = vpop.f32.mrb[0].mxu0
    %v113 = vadd.f32 %v55, %v112
    %v114 = vpop.f32.mrb[0].mxu0
    %v115 = vpop.f32.mrb[0].mxu0
    %v116 = vadd.f32 %v55, %v115
    %v117 = vpop.f32.mrb[0].mxu0
    %118 = vdwg.mxu0
    %v119 = vpack.c.bf16 %v116, %v113
    %v121 = vunpack.c.l.b16 %v119
    %v122 = vunpack.c.h.b16 %v119
    %v123 = vpack.c.b16 %v121, %v121
    %v124 = vpack.c.b16 %v122, %v122
    %vm127 = vcmask 257024
    %128 = vst.msk [vmem:[#allocation7] sm:$0xf] %vm127, %v123
    %129 = vst.msk [vmem:[#allocation7 + $0x4] sm:$0xf] %vm127, %v124
    // Predicated region
    $region22: #{tpu_custom_call.1} parent=1 // pred_check
      _
    $region23: #{tpu_custom_call.1} parent=1 // pred_check_branch
      %131 = sbr.rel (0) target = $region25
    $region24: #{tpu_custom_call.1} parent=1 // pred_region
      %s133 = ssub.s32 128, 128
      %134 = vsyncadd [#allocation4], %s133
      %s135 = sshll.u32 [#allocation7], 4
      %s136 = int_to_ptr.vmem [resolvable:$true] %s135
      %141 = dma.vmem_to_hbm [thread:$0]  %s136, 128, %s3, [#allocation4], 64, 64, 4
    $region25: #{tpu_custom_call.1} parent=1 // pred_fallthru
      _
    // Predicated region
    $region26: #{tpu_custom_call.1} parent=1 // pred_check
      _
    $region27: #{tpu_custom_call.1} parent=1 // pred_check_branch
      %143 = sbr.rel (0) target = $region29
    $region28: #{tpu_custom_call.1} parent=1 // pred_region
      %144 = dma.done [#allocation4], 128
    $region29: #{tpu_custom_call.1} parent=1 // pred_fallthru
      _
    %145 = vsyncpa [#allocation3], 1
    %146 = vsyncpa [#allocation6], 1
    %147 = vsyncpa [#allocation4], 1

</llo_original>
